<compile_context>
chip_gen: v7x
topology: tpu7x:2x2x1
jax: 0.10.0
libtpu: 0.0.40
codegen_flags: <defaults>
</compile_context>

<pallas_src>
import math

import jax
import jax.numpy as jnp
from jax.experimental import pallas as pl
from jax.experimental.pallas import tpu as pltpu

LANE = 128


def _round_up(a, b):
    return (a + b - 1) // b * b


def _cdiv(a, b):
    return -(-a // b)


# ----------------------------------------------------------------------------
# Logical (un-padded) parameters — same layout the PyTorch module implies.
# ----------------------------------------------------------------------------
def make_dnn_params(key, in_dims, out_dims, emb_size):
    """Deterministic xavier-normal weights, zero biases (weights stored [in, out])."""
    assert out_dims[0] == in_dims[-1]
    assert emb_size % 2 == 0, "emb_size must be even (sinusoidal embedding)"
    d_in, hidden = in_dims[0], in_dims[1]
    d_out = out_dims[1]

    def xavier(k, fan_in, fan_out):
        std = math.sqrt(2.0 / (fan_in + fan_out))
        return std * jax.random.normal(k, (fan_in, fan_out), dtype=jnp.float32)

    k1, k2, k3 = jax.random.split(key, 3)
    return {
        "w_emb": xavier(k1, emb_size, emb_size),
        "b_emb": jnp.zeros((1, emb_size), jnp.float32),
        "w1": xavier(k2, d_in + emb_size, hidden),   # first in_layer: [D_in+E, H]
        "b1": jnp.zeros((1, hidden), jnp.float32),
        "w2": xavier(k3, hidden, d_out),             # out_layer: [H, D_out]
        "b2": jnp.zeros((1, d_out), jnp.float32),
    }


# ----------------------------------------------------------------------------
# One-time kernel-parameter prep:
#   * fold emb_layer into in_layer (pure linear composition -> exact),
#   * split the folded weight into cos/sin row halves and the x part,
#   * zero-pad all lane dims to 128, pack the two biases into one [2, 128].
# Padding / folding happen here, NOT per forward call.
# ----------------------------------------------------------------------------
def pad_dnn_params(params, in_dims, emb_size, compute_dtype=jnp.float32):
    d_in = in_dims[0]
    E = emb_size
    half = E // 2
    H = params["w1"].shape[1]
    d_out = params["w2"].shape[1]
    H_pad = _round_up(H, LANE)
    D_out_pad = _round_up(d_out, LANE)
    B = max(H_pad, D_out_pad)

    w1x = params["w1"][:d_in]                          # [d_in, H]  (x part)
    w1e = params["w1"][d_in:]                          # [E, H]     (emb part)
    w_fused = params["w_emb"] @ w1e                    # [E, H]     emb layer folded in
    b1_fused = params["b_emb"] @ w1e + params["b1"]    # [1, H]

    def pad2(w, rows, cols):
        return jnp.pad(w, ((0, rows - w.shape[0]), (0, cols - w.shape[1])))

    biases = jnp.stack([
        jnp.pad(b1_fused[0], (0, B - H)),
        jnp.pad(params["b2"][0], (0, B - d_out)),
    ])  # [2, B]   (biases stay f32; they are added to the f32 accumulators)

    cd = compute_dtype
    return {
        "w1x": pad2(w1x, d_in, H_pad).astype(cd),            # [d_in, H_pad]
        "w_cos": pad2(w_fused[:half], half, H_pad).astype(cd),  # [half, H_pad]
        "w_sin": pad2(w_fused[half:], half, H_pad).astype(cd),  # [half, H_pad]
        "w2": pad2(params["w2"], H_pad, D_out_pad).astype(cd),  # [H_pad, D_out_pad]
        "b": biases,                                          # [2, B] f32
        "emb_size": E,
        "d_in": d_in,
        "d_out": d_out,
        "H_pad": H_pad,
        "D_out_pad": D_out_pad,
        "compute_dtype": cd,
    }


# ----------------------------------------------------------------------------
# Forward: batch-tiled grid, VMEM-resident weights, lane-dense 128-wide output.
# ----------------------------------------------------------------------------
def dnn_forward(x, timesteps, kp, max_period=10000.0, block_n=512):
    n, d_in = x.shape
    assert d_in == kp["d_in"]
    E = kp["emb_size"]
    half = E // 2
    H_pad, D_out_pad = kp["H_pad"], kp["D_out_pad"]
    d_out = kp["d_out"]
    cd = kp["compute_dtype"]

    # Host-side glue (cheap): args = ts * freqs, shape [n, half].  cos/sin are
    # computed in-kernel (EUP slot) in f32 so range reduction stays accurate.
    freqs = jnp.exp(
        -math.log(max_period) * jnp.arange(half, dtype=jnp.float32) / half
    )
    args = timesteps.astype(jnp.float32)[:, None] * freqs[None]        # [n, half]

    # Batch tiling: near-equal 8-aligned chunks (avoids up-to-(tn-1)-row padding
    # blowup) and >= 2 grid steps whenever n allows so the "parallel" batch axis
    # shards across v7x's two TensorCores.  Single TC chips are unaffected.
    n8 = _round_up(n, 8)
    if n8 <= 8:
        tn = n8
    else:
        num_chunks = max(2, _cdiv(n8, block_n))
        tn = min(block_n, _round_up(_cdiv(n8, num_chunks), 8))
    n_pad = _round_up(n8, tn)
    grid = (n_pad // tn,)

    x = x.astype(cd)
    if n_pad != n:
        x = jnp.pad(x, ((0, n_pad - n), (0, 0)))
        args = jnp.pad(args, ((0, n_pad - n), (0, 0)))

    def kernel(args_ref, x_ref, w1x_ref, wcos_ref, wsin_ref, w2_ref, b_ref, out_ref):
        a = args_ref[...]                                              # [tn, half] f32
        cos_a = jnp.cos(a).astype(cd)
        sin_a = jnp.sin(a).astype(cd)

        # NOTE: nn.Dropout in eval mode is identity (inference kernel).
        # TODO(synk): training-mode dropout (RNG mask) not implemented.
        pre = (
            jnp.dot(x_ref[...], w1x_ref[...], preferred_element_type=jnp.float32)
            + jnp.dot(cos_a, wcos_ref[...], preferred_element_type=jnp.float32)
            + jnp.dot(sin_a, wsin_ref[...], preferred_element_type=jnp.float32)
            + b_ref[0:1, :H_pad]
        )                                                              # [tn, H_pad] f32
        h = jnp.tanh(pre).astype(cd)

        out = (
            jnp.dot(h, w2_ref[...], preferred_element_type=jnp.float32)
            + b_ref[1:2, :D_out_pad]
        )                                                              # [tn, D_out_pad]
        out_ref[...] = out.astype(out_ref.dtype)

    const = lambda i: (0, 0)        # weights: same block every step -> stay resident

    wbytes = jnp.dtype(cd).itemsize
    flops = 2 * n_pad * (d_in * H_pad + E * H_pad + H_pad * D_out_pad)
    transcendentals = n_pad * (E + H_pad)          # cos + sin over half lanes each, tanh
    bytes_accessed = (
        4 * args.size
        + wbytes * x.size
        + wbytes * (kp["w1x"].size + kp["w_cos"].size + kp["w_sin"].size + kp["w2"].size)
        + 4 * kp["b"].size
        + 4 * n_pad * D_out_pad
    )

    out_padded = pl.pallas_call(
        kernel,
        out_shape=jax.ShapeDtypeStruct((n_pad, D_out_pad), jnp.float32),
        grid=grid,
        in_specs=[
            pl.BlockSpec((tn, half), lambda i: (i, 0)),      # args (f32)
            pl.BlockSpec((tn, d_in), lambda i: (i, 0)),      # x
            pl.BlockSpec((d_in, H_pad), const),              # w1 (x part)
            pl.BlockSpec((half, H_pad), const),              # folded emb weight, cos rows
            pl.BlockSpec((half, H_pad), const),              # folded emb weight, sin rows
            pl.BlockSpec((H_pad, D_out_pad), const),         # w2
            pl.BlockSpec((2, kp["b"].shape[1]), const),      # packed fused biases
        ],
        out_specs=pl.BlockSpec((tn, D_out_pad), lambda i: (i, 0)),
        compiler_params=pltpu.CompilerParams(
            dimension_semantics=("parallel",),
        ),
        cost_estimate=pl.CostEstimate(
            flops=flops,
            transcendentals=transcendentals,
            bytes_accessed=bytes_accessed,
        ),
    )(args, x, kp["w1x"], kp["w_cos"], kp["w_sin"], kp["w2"], kp["b"])

    # Slice off the lane padding (D_out) and the batch padding.
    return out_padded[:n, :d_out]


# ----------------------------------------------------------------------------
# Pure-JAX reference (mirrors the PyTorch forward exactly, eval-mode dropout).
# ----------------------------------------------------------------------------
def dnn_reference(x, timesteps, params, emb_size, max_period=10000.0):
    half = emb_size // 2
    freqs = jnp.exp(
        -math.log(max_period) * jnp.arange(half, dtype=jnp.float32) / half
    )
    args = timesteps.astype(jnp.float32)[:, None] * freqs[None]
    time_emb = jnp.concatenate([jnp.cos(args), jnp.sin(args)], axis=-1)
    emb = time_emb @ params["w_emb"] + params["b_emb"]
    h = jnp.concatenate([x, emb], axis=-1)
    h = jnp.tanh(h @ params["w1"] + params["b1"])
    return h @ params["w2"] + params["b2"]


if __name__ == "__main__":
    # Small shapes consistent with the module:
    #   in_dims = [64, 32], out_dims = [32, 64], emb_size = 16
    in_dims = [64, 32]
    out_dims = [32, 64]
    emb_size = 16

    key = jax.random.PRNGKey(0)
    kx, kt, kp_key, kx2, kt2 = jax.random.split(key, 5)
    params = make_dnn_params(kp_key, in_dims, out_dims, emb_size)

    # ---- f32 latency path (tiny batch, single tile) ----
    batch = 8
    x = jax.random.normal(kx, (batch, in_dims[0]), dtype=jnp.float32)
    timesteps = jax.random.randint(kt, (batch,), 0, 1000).astype(jnp.float32)

    kp_f32 = pad_dnn_params(params, in_dims, emb_size)           # one-time prep
    out = jax.block_until_ready(dnn_forward(x, timesteps, kp_f32))
    ref = dnn_reference(x, timesteps, params, emb_size)
    assert out.shape == (batch, out_dims[1])
    assert jnp.allclose(out, ref, atol=1e-4, rtol=1e-4), "f32 mismatch vs reference"

    # ---- bf16 throughput path (larger batch, >=2 grid steps -> both v7x TCs) ----
    batch2 = 256
    x2 = jax.random.normal(kx2, (batch2, in_dims[0]), dtype=jnp.float32)
    timesteps2 = jax.random.randint(kt2, (batch2,), 0, 1000).astype(jnp.float32)

    kp_bf16 = pad_dnn_params(params, in_dims, emb_size, compute_dtype=jnp.bfloat16)
    out2 = jax.block_until_ready(dnn_forward(x2, timesteps2, kp_bf16))
    ref2 = dnn_reference(x2, timesteps2, params, emb_size)
    assert out2.shape == (batch2, out_dims[1])
    assert jnp.allclose(out2, ref2, atol=5e-2, rtol=5e-2), "bf16 mismatch vs reference"

    print("KERNEL_OK")
</pallas_src>

<mosaic_0001>
module attributes {stable_mosaic.version = 11 : i64} {
  func.func @kernel(%arg0: i32, %arg1: memref<8x8xf32, #tpu.memory_space<vmem>>, %arg2: memref<8x64xf32, #tpu.memory_space<vmem>>, %arg3: memref<64x128xf32, #tpu.memory_space<vmem>>, %arg4: memref<8x128xf32, #tpu.memory_space<vmem>>, %arg5: memref<8x128xf32, #tpu.memory_space<vmem>>, %arg6: memref<128x128xf32, #tpu.memory_space<vmem>>, %arg7: memref<2x128xf32, #tpu.memory_space<vmem>>, %arg8: memref<8x128xf32, #tpu.memory_space<vmem>>) attributes {dimension_semantics = [#tpu.dimension_semantics<parallel>], iteration_bounds = array<i64: 1>, scalar_prefetch = 0 : i64, scratch_operands = 0 : i64, tpu.core_type = #tpu.core_type<tc>, window_params = [{transform_indices = @transform_0, window_bounds = array<i64: 8, 8>}, {transform_indices = @transform_1, window_bounds = array<i64: 8, 64>}, {pipeline_mode = #tpu.pipeline_mode<synchronous>, transform_indices = @transform_2, window_bounds = array<i64: 64, 128>}, {pipeline_mode = #tpu.pipeline_mode<synchronous>, transform_indices = @transform_3, window_bounds = array<i64: 8, 128>}, {pipeline_mode = #tpu.pipeline_mode<synchronous>, transform_indices = @transform_4, window_bounds = array<i64: 8, 128>}, {pipeline_mode = #tpu.pipeline_mode<synchronous>, transform_indices = @transform_5, window_bounds = array<i64: 128, 128>}, {pipeline_mode = #tpu.pipeline_mode<synchronous>, transform_indices = @transform_6, window_bounds = array<i64: 2, 128>}, {transform_indices = @transform_7, window_bounds = array<i64: 8, 128>}]} {
    %c0 = arith.constant 0 : index
    %c0_0 = arith.constant 0 : index
    %0 = vector.load %arg1[%c0, %c0_0] : memref<8x8xf32, #tpu.memory_space<vmem>>, vector<8x8xf32>
    %1 = math.cos %0 : vector<8x8xf32>
    %2 = math.sin %0 : vector<8x8xf32>
    %c0_1 = arith.constant 0 : index
    %c0_2 = arith.constant 0 : index
    %3 = vector.load %arg2[%c0_1, %c0_2] : memref<8x64xf32, #tpu.memory_space<vmem>>, vector<8x64xf32>
    %c0_3 = arith.constant 0 : index
    %c0_4 = arith.constant 0 : index
    %4 = vector.load %arg3[%c0_3, %c0_4] : memref<64x128xf32, #tpu.memory_space<vmem>>, vector<64x128xf32>
    %cst = arith.constant dense<0.000000e+00> : vector<8x128xf32>
    %5 = tpu.matmul %3, %4, %cst {dimension_numbers = #tpu.dot_dimension_numbers<[1], [0], [0], [1], [0, 0, 1, 1], [], []>} : vector<8x64xf32>, vector<64x128xf32>, vector<8x128xf32> -> vector<8x128xf32>
    %c0_5 = arith.constant 0 : index
    %c0_6 = arith.constant 0 : index
    %6 = vector.load %arg4[%c0_5, %c0_6] : memref<8x128xf32, #tpu.memory_space<vmem>>, vector<8x128xf32>
    %cst_7 = arith.constant dense<0.000000e+00> : vector<8x128xf32>
    %7 = tpu.matmul %1, %6, %cst_7 {dimension_numbers = #tpu.dot_dimension_numbers<[1], [0], [0], [1], [0, 0, 1, 1], [], []>} : vector<8x8xf32>, vector<8x128xf32>, vector<8x128xf32> -> vector<8x128xf32>
    %8 = arith.addf %5, %7 : vector<8x128xf32>
    %c0_8 = arith.constant 0 : index
    %c0_9 = arith.constant 0 : index
    %9 = vector.load %arg5[%c0_8, %c0_9] : memref<8x128xf32, #tpu.memory_space<vmem>>, vector<8x128xf32>
    %cst_10 = arith.constant dense<0.000000e+00> : vector<8x128xf32>
    %10 = tpu.matmul %2, %9, %cst_10 {dimension_numbers = #tpu.dot_dimension_numbers<[1], [0], [0], [1], [0, 0, 1, 1], [], []>} : vector<8x8xf32>, vector<8x128xf32>, vector<8x128xf32> -> vector<8x128xf32>
    %11 = arith.addf %8, %10 : vector<8x128xf32>
    %c0_11 = arith.constant 0 : index
    %c0_12 = arith.constant 0 : index
    %12 = vector.load %arg7[%c0_11, %c0_12] : memref<2x128xf32, #tpu.memory_space<vmem>>, vector<1x128xf32>
    %13 = vector.broadcast %12 : vector<1x128xf32> to vector<8x128xf32>
    %14 = arith.addf %11, %13 : vector<8x128xf32>
    %15 = math.tanh %14 : vector<8x128xf32>
    %c0_13 = arith.constant 0 : index
    %c0_14 = arith.constant 0 : index
    %16 = vector.load %arg6[%c0_13, %c0_14] : memref<128x128xf32, #tpu.memory_space<vmem>>, vector<128x128xf32>
    %cst_15 = arith.constant dense<0.000000e+00> : vector<8x128xf32>
    %17 = tpu.matmul %15, %16, %cst_15 {dimension_numbers = #tpu.dot_dimension_numbers<[1], [0], [0], [1], [0, 0, 1, 1], [], []>} : vector<8x128xf32>, vector<128x128xf32>, vector<8x128xf32> -> vector<8x128xf32>
    %c1 = arith.constant 1 : index
    %c0_16 = arith.constant 0 : index
    %18 = vector.load %arg7[%c1, %c0_16] : memref<2x128xf32, #tpu.memory_space<vmem>>, vector<1x128xf32>
    %19 = vector.broadcast %18 : vector<1x128xf32> to vector<8x128xf32>
    %20 = arith.addf %17, %19 : vector<8x128xf32>
    %c0_17 = arith.constant 0 : index
    %c0_18 = arith.constant 0 : index
    %21 = vector.load %arg8[%c0_17, %c0_18] : memref<8x128xf32, #tpu.memory_space<vmem>>, vector<8x128xf32>
    tpu.vector_store %arg8[%c0_17, %c0_18], %20 {strides = array<i32>} : memref<8x128xf32, #tpu.memory_space<vmem>>, vector<8x128xf32>,
    return
  }
  func.func @transform_0(%arg0: i32) -> (i32, i32) {
    %c0_i32 = arith.constant 0 : i32
    %c0_i32_0 = arith.constant 0 : i32
    return %arg0, %c0_i32 : i32, i32
  }
  func.func @transform_1(%arg0: i32) -> (i32, i32) {
    %c0_i32 = arith.constant 0 : i32
    %c0_i32_0 = arith.constant 0 : i32
    return %arg0, %c0_i32 : i32, i32
  }
  func.func @transform_2(%arg0: i32) -> (i32, i32) {
    %c0_i32 = arith.constant 0 : i32
    %c0_i32_0 = arith.constant 0 : i32
    %c0_i32_1 = arith.constant 0 : i32
    return %c0_i32, %c0_i32_0 : i32, i32
  }
  func.func @transform_3(%arg0: i32) -> (i32, i32) {
    %c0_i32 = arith.constant 0 : i32
    %c0_i32_0 = arith.constant 0 : i32
    %c0_i32_1 = arith.constant 0 : i32
    return %c0_i32, %c0_i32_0 : i32, i32
  }
  func.func @transform_4(%arg0: i32) -> (i32, i32) {
    %c0_i32 = arith.constant 0 : i32
    %c0_i32_0 = arith.constant 0 : i32
    %c0_i32_1 = arith.constant 0 : i32
    return %c0_i32, %c0_i32_0 : i32, i32
  }
  func.func @transform_5(%arg0: i32) -> (i32, i32) {
    %c0_i32 = arith.constant 0 : i32
    %c0_i32_0 = arith.constant 0 : i32
    %c0_i32_1 = arith.constant 0 : i32
    return %c0_i32, %c0_i32_0 : i32, i32
  }
  func.func @transform_6(%arg0: i32) -> (i32, i32) {
    %c0_i32 = arith.constant 0 : i32
    %c0_i32_0 = arith.constant 0 : i32
    %c0_i32_1 = arith.constant 0 : i32
    return %c0_i32, %c0_i32_0 : i32, i32
  }
  func.func @transform_7(%arg0: i32) -> (i32, i32) {
    %c0_i32 = arith.constant 0 : i32
    %c0_i32_0 = arith.constant 0 : i32
    return %arg0, %c0_i32 : i32, i32
  }
}

</mosaic_0001>

<llo_original>
// kernel: tpu_custom_call.1
$region0: #{tpu_custom_call.1}
  #allocation0 [shape = 'u32[]', space=smem, size = 0x4, offset = 0x4, fixed_abs, tag = 'smem constant byte address 0x4 - core index']
  #allocation1 [shape = 'u32[144,128]{1,0:T(1,128)}', space=vmem, size = 0x12000, scoped, tag = 'internal scratch']
  %s0 = inlined_call_operand.hbm [shape: f32[8,8], index: 0, kind: input, shape index: {}]
  %s1 = inlined_call_operand.hbm [shape: f32[8,64], index: 1, kind: input, shape index: {}]
  %s2 = inlined_call_operand.hbm [shape: f32[64,128], index: 2, kind: input, shape index: {}]
  %s3 = inlined_call_operand.vmem [shape: f32[8,128], index: 3, kind: input, shape index: {}]
  %s4 = inlined_call_operand.hbm [shape: f32[8,128], index: 4, kind: input, shape index: {}]
  %s5 = inlined_call_operand.hbm [shape: f32[128,128], index: 5, kind: input, shape index: {}]
  %s6 = inlined_call_operand.vmem [shape: f32[2,128], index: 6, kind: input, shape index: {}]
  %s7 = inlined_call_operand.hbm [shape: f32[8,128], index: 7, kind: output, shape index: {}]
  %s8 = sld [smem:[#allocation0]]
  $region58: #{tpu_custom_call.1} parent=0
    _
  %s10 = ssub.s32 1, %s8
  %s11 = scalar_select 0, %s10, %s8
  $region1: #{tpu_custom_call.1} parent=0
    #allocation2 [shape = 'u8[4096]{0}', space=vmem, size = 0x1000, scoped, tag = 'input window, operand 0, single buffered']
    #allocation3 [shape = 's32[1]{0}', space=sflag, size = 0x4, scoped, tag = 'scoped memory for tpu_custom_call.1']
    #allocation4 [shape = 's32[1]{0}', space=sflag, size = 0x4, scoped, tag = 'scoped memory for tpu_custom_call.1']
    #allocation5 [shape = 'u8[4096]{0}', space=vmem, size = 0x1000, scoped, tag = 'input window, operand 1, single buffered']
    #allocation6 [shape = 's32[1]{0}', space=sflag, size = 0x4, scoped, tag = 'scoped memory for tpu_custom_call.1']
    #allocation7 [shape = 'u8[32768]{0}', space=vmem, size = 0x8000, scoped, tag = 'input window, operand 2, single buffered']
    #allocation8 [shape = 'u8[4096]{0}', space=vmem, size = 0x1000, scoped, tag = 'input window, operand 4, single buffered']
    #allocation9 [shape = 's32[1]{0}', space=sflag, size = 0x4, scoped, tag = 'scoped memory for tpu_custom_call.1']
    #allocation10 [shape = 'u8[65536]{0}', space=vmem, size = 0x10000, scoped, tag = 'input window, operand 5, single buffered']
    #allocation11 [shape = 'u8[4096]{0}', space=vmem, size = 0x1000, scoped, tag = 'output window, operand 0, single buffered']
    %12 = vsyncpa [#allocation3], 0
    %13 = vsyncpa [#allocation6], 0
    %14 = vsyncpa [#allocation9], 0
    %15 = vsyncpa [#allocation4], 0
    // Predicated region
    $region2: #{tpu_custom_call.1} parent=1 // pred_check
      _
    $region3: #{tpu_custom_call.1} parent=1 // pred_check_branch
      %17 = sbr.rel (0) target = $region5
    $region4: #{tpu_custom_call.1} parent=1 // pred_region
      %s19 = ssub.s32 128, 128
      %20 = vsyncadd [#allocation3], %s19
      %s22 = sshll.u32 [#allocation2], 4
      %s23 = int_to_ptr.vmem [resolvable:$true] %s22
      %25 = dma.hbm_to_vmem [thread:$0]  %s0, 128, %s23, [#allocation3]
    $region5: #{tpu_custom_call.1} parent=1 // pred_fallthru
      _
    // Predicated region
    $region6: #{tpu_custom_call.1} parent=1 // pred_check
      _
    $region7: #{tpu_custom_call.1} parent=1 // pred_check_branch
      %27 = sbr.rel (0) target = $region9
    $region8: #{tpu_custom_call.1} parent=1 // pred_region
      %s29 = ssub.s32 128, 128
      %30 = vsyncadd [#allocation6], %s29
      %s32 = sshll.u32 [#allocation5], 4
      %s33 = int_to_ptr.vmem [resolvable:$true] %s32
      %35 = dma.hbm_to_vmem [thread:$0]  %s1, 128, %s33, [#allocation6]
    $region9: #{tpu_custom_call.1} parent=1 // pred_fallthru
      _
    // Predicated region
    $region10: #{tpu_custom_call.1} parent=1 // pred_check
      _
    $region11: #{tpu_custom_call.1} parent=1 // pred_check_branch
      %37 = sbr.rel (0) target = $region13
    $region12: #{tpu_custom_call.1} parent=1 // pred_region
      %s39 = ssub.s32 1024, 1024
      %40 = vsyncadd [#allocation6], %s39
      %s41 = sshll.u32 [#allocation7], 4
      %s42 = int_to_ptr.vmem [resolvable:$true] %s41
      %47 = dma.hbm_to_vmem [thread:$0]  %s2, 1024, %s42, [#allocation6], 128, 128, 8
    $region13: #{tpu_custom_call.1} parent=1 // pred_fallthru
      _
    // Predicated region
    $region14: #{tpu_custom_call.1} parent=1 // pred_check
      _
    $region15: #{tpu_custom_call.1} parent=1 // pred_check_branch
      %49 = sbr.rel (0) target = $region17
    $region16: #{tpu_custom_call.1} parent=1 // pred_region
      _
    $region17: #{tpu_custom_call.1} parent=1 // pred_fallthru
      _
    // Predicated region
    $region18: #{tpu_custom_call.1} parent=1 // pred_check
      _
    $region19: #{tpu_custom_call.1} parent=1 // pred_check_branch
      %51 = sbr.rel (0) target = $region21
    $region20: #{tpu_custom_call.1} parent=1 // pred_region
      %s53 = ssub.s32 128, 128
      %54 = vsyncadd [#allocation9], %s53
      %s56 = sshll.u32 [#allocation8], 4
      %s57 = int_to_ptr.vmem [resolvable:$true] %s56
      %59 = dma.hbm_to_vmem [thread:$0]  %s4, 128, %s57, [#allocation9]
    $region21: #{tpu_custom_call.1} parent=1 // pred_fallthru
      _
    // Predicated region
    $region22: #{tpu_custom_call.1} parent=1 // pred_check
      _
    $region23: #{tpu_custom_call.1} parent=1 // pred_check_branch
      %61 = sbr.rel (0) target = $region25
    $region24: #{tpu_custom_call.1} parent=1 // pred_region
      %s63 = ssub.s32 2048, 2048
      %64 = vsyncadd [#allocation9], %s63
      %s65 = sshll.u32 [#allocation10], 4
      %s66 = int_to_ptr.vmem [resolvable:$true] %s65
      %71 = dma.hbm_to_vmem [thread:$0]  %s5, 2048, %s66, [#allocation9], 128, 128, 8
    $region25: #{tpu_custom_call.1} parent=1 // pred_fallthru
      _
    // Predicated region
    $region26: #{tpu_custom_call.1} parent=1 // pred_check
      _
    $region27: #{tpu_custom_call.1} parent=1 // pred_check_branch
      %73 = sbr.rel (0) target = $region29
    $region28: #{tpu_custom_call.1} parent=1 // pred_region
      _
    $region29: #{tpu_custom_call.1} parent=1 // pred_fallthru
      _
    // Predicated region
    $region30: #{tpu_custom_call.1} parent=1 // pred_check
      _
    $region31: #{tpu_custom_call.1} parent=1 // pred_check_branch
      %75 = sbr.rel (0) target = $region33
    $region32: #{tpu_custom_call.1} parent=1 // pred_region
      %76 = dma.done [#allocation3], 128
    $region33: #{tpu_custom_call.1} parent=1 // pred_fallthru
      _
    // Predicated region
    $region34: #{tpu_custom_call.1} parent=1 // pred_check
      _
    $region35: #{tpu_custom_call.1} parent=1 // pred_check_branch
      %78 = sbr.rel (0) target = $region37
    $region36: #{tpu_custom_call.1} parent=1 // pred_region
      %79 = dma.done [#allocation6], 128
    $region37: #{tpu_custom_call.1} parent=1 // pred_fallthru
      _
    // Predicated region
    $region38: #{tpu_custom_call.1} parent=1 // pred_check
      _
    $region39: #{tpu_custom_call.1} parent=1 // pred_check_branch
      %81 = sbr.rel (0) target = $region41
    $region40: #{tpu_custom_call.1} parent=1 // pred_region
      %82 = dma.done [#allocation6], 1024
    $region41: #{tpu_custom_call.1} parent=1 // pred_fallthru
      _
    // Predicated region
    $region42: #{tpu_custom_call.1} parent=1 // pred_check
      _
    $region43: #{tpu_custom_call.1} parent=1 // pred_check_branch
      %84 = sbr.rel (0) target = $region45
    $region44: #{tpu_custom_call.1} parent=1 // pred_region
      %85 = dma.done [#allocation9], 128
    $region45: #{tpu_custom_call.1} parent=1 // pred_fallthru
      _
    // Predicated region
    $region46: #{tpu_custom_call.1} parent=1 // pred_check
      _
    $region47: #{tpu_custom_call.1} parent=1 // pred_check_branch
      %87 = sbr.rel (0) target = $region49
    $region48: #{tpu_custom_call.1} parent=1 // pred_region
      %88 = dma.done [#allocation9], 2048
    $region49: #{tpu_custom_call.1} parent=1 // pred_fallthru
      _
    %v89 = vld [vmem:[#allocation2] sm:$0xff]
    %v90 = vand.u32 2147483647, %v89
    %vm91 = vcmp.le.f32.partialorder %v90, 0.7853982
    %vm92 = vcmp.lt.s32.totalorder %v89, 0
    %v93 = vand.u32 %v89, 2139095040
    %v94 = vshrl.u32 %v93, 23
    %v95 = vsub.s32 %v94, 127
    %v96 = vand.u32 2147483647, %v89
    %v97 = vand.u32 %v96, 8388607
    %v98 = vor.u32 %v97, 8388608
    %v99 = vsub.s32 0, %v98
    %v100 = vadd.s32 %v95, 1
    %vm101 = vcmp.gt.s32.totalorder %v100, 0
    %v102 = vsel %vm101, %v100, 0
    %v103 = vshrl.u32 %v102, 5
    %v104 = vand.u32 %v102, 31
    %v105 = vsub.s32 32, %v104
    %v106 = vshrl.u32 683565275, %v105
    %v107 = vshll.u32 683565275, %v104
    %v108 = vshrl.u32 2475754826, %v105
    %v109 = vor.u32 %v107, %v108
    %v110 = vshll.u32 2475754826, %v104
    %v111 = vshrl.u32 2131351028, %v105
    %v112 = vor.u32 %v110, %v111
    %v113 = vshll.u32 2131351028, %v104
    %v114 = vshrl.u32 2102212464, %v105
    %v115 = vor.u32 %v113, %v114
    %v116 = vshll.u32 2102212464, %v104
    %v117 = vshrl.u32 920167782, %v105
    %v118 = vor.u32 %v116, %v117
    %v119 = vshll.u32 920167782, %v104
    %v120 = vshrl.u32 1326507024, %v105
    %v121 = vor.u32 %v119, %v120
    %vm122 = vcmp.lt.s32.totalorder %v103, 1
    %vm123 = vcmp.lt.s32.totalorder %v103, 2
    %vm124 = vcmp.lt.s32.totalorder %v103, 3
    %vm125 = vcmp.lt.s32.totalorder %v103, 4
    %v126 = vsel %vm122, %v106, %v109
    %v127 = vsel %vm125, %v115, 2102212464
    %v128 = vsel %vm124, %v112, %v127
    %v129 = vsel %vm123, %v126, %v128
    %v130 = vsel %vm122, %v109, %v112
    %v131 = vsel %vm125, %v118, 920167782
    %v132 = vsel %vm124, %v115, %v131
    %v133 = vsel %vm123, %v130, %v132
    %v134 = vsel %vm122, %v112, %v115
    %v135 = vsel %vm125, %v121, 1326507024
    %v136 = vsel %vm124, %v118, %v135
    %v137 = vsel %vm123, %v134, %v136
    %v138 = vshll.u32 %v98, 8
    %v139 = vmul.u32.u64.compose %v138, %v137
    %v140 = vextract.low.u32 %v139
    %v141 = vextract.high.u32 %v139
    %v142 = vmul.u32.u64.compose %v138, %v133
    %v143 = vextract.low.u32 %v142
    %v144 = vextract.high.u32 %v142
    %v145 = vmul.u32 %v138, %v129
    %v146 = vadd.s32 %v141, %v143
    %vm147 = vc.u32 %v141, %v143
    %v148 = vadd.s32 %v144, 1
    %v149 = vsel %vm147, %v148, %v144
    %v150 = vadd.s32 %v145, %v149
    %v151 = vadd.s32 %v150, 536870912
    %v152 = vshrl.u32 %v151, 30
    %v153 = vshll.u32 %v152, 30
    %v154 = vsub.s32 %v150, %v153
    %vm155 = vcmp.lt.s32.totalorder %v154, 0
    %v156 = vsub.s32 0, %v154
    %v157 = vsel %vm155, %v156, %v154
    %v158 = vclz %v157
    %v159 = vsub.s32 %v158, 2
    %vm160 = vcmp.gt.s32.totalorder 0, %v159
    %v161 = vsel %vm160, 0, %v159
    %v162 = vsub.s32 32, %v161
    %v163 = vshll.u32 %v154, %v161
    %v164 = vshrl.u32 %v146, %v162
    %v165 = vor.u32 %v163, %v164
    %v166 = vsub.s32 4294967266, %v161
    %v167 = vadd.s32 %v166, 127
    %v168 = vshll.u32 %v167, 23
    %v169 = vor.u32 4788187, %v168
    %v170 = vand.u32 2147483647, %v169
    %v172 = vcvt.s32.f32 %v165
    %v173 = vmul.f32 %v172, %v170
    %v174 = vxor.u32 %v173, 2147483648
    %v175 = vsel %vm92, %v174, %v173
    %v176 = vsub.s32 4, %v152
    %v177 = vsel %vm92, %v176, %v152
    %v178 = vsel %vm91, %v89, %v175
    %v179 = vsel %vm91, 0, %v177
    %v180 = vcosq.f32.pop %v178
    %v181 = vsinq.f32.pop %v178
    %vm182 = vweird.f32 %v89
    %v183 = vand.u32 %v179, 3
    %vm184 = vcmp.lt.s32.totalorder %v183, 2
    %vm185 = vcmp.eq.s32.totalorder %v183, 0
    %v186 = vxor.u32 %v181, 2147483648
    %v187 = vsel %vm185, %v180, %v186
    %vm188 = vcmp.eq.s32.totalorder %v183, 2
    %v189 = vxor.u32 %v180, 2147483648
    %v190 = vsel %vm188, %v189, %v181
    %v191 = vsel %vm184, %v187, %v190
    %v192 = vsel %vm182, nan, %v191
    %v193 = vand.u32 2147483647, %v89
    %vm194 = vcmp.le.f32.partialorder %v193, 0.7853982
    %vm195 = vcmp.lt.s32.totalorder %v89, 0
    %v196 = vand.u32 %v89, 2139095040
    %v197 = vshrl.u32 %v196, 23
    %v198 = vsub.s32 %v197, 127
    %v199 = vand.u32 2147483647, %v89
    %v200 = vand.u32 %v199, 8388607
    %v201 = vor.u32 %v200, 8388608
    %v202 = vsub.s32 0, %v201
    %v203 = vadd.s32 %v198, 1
    %vm204 = vcmp.gt.s32.totalorder %v203, 0
    %v205 = vsel %vm204, %v203, 0
    %v206 = vshrl.u32 %v205, 5
    %v207 = vand.u32 %v205, 31
    %v208 = vsub.s32 32, %v207
    %v209 = vshrl.u32 683565275, %v208
    %v210 = vshll.u32 683565275, %v207
    %v211 = vshrl.u32 2475754826, %v208
    %v212 = vor.u32 %v210, %v211
    %v213 = vshll.u32 2475754826, %v207
    %v214 = vshrl.u32 2131351028, %v208
    %v215 = vor.u32 %v213, %v214
    %v216 = vshll.u32 2131351028, %v207
    %v217 = vshrl.u32 2102212464, %v208
    %v218 = vor.u32 %v216, %v217
    %v219 = vshll.u32 2102212464, %v207
    %v220 = vshrl.u32 920167782, %v208
    %v221 = vor.u32 %v219, %v220
    %v222 = vshll.u32 920167782, %v207
    %v223 = vshrl.u32 1326507024, %v208
    %v224 = vor.u32 %v222, %v223
    %vm225 = vcmp.lt.s32.totalorder %v206, 1
    %vm226 = vcmp.lt.s32.totalorder %v206, 2
    %vm227 = vcmp.lt.s32.totalorder %v206, 3
    %vm228 = vcmp.lt.s32.totalorder %v206, 4
    %v229 = vsel %vm225, %v209, %v212
    %v230 = vsel %vm228, %v218, 2102212464
    %v231 = vsel %vm227, %v215, %v230
    %v232 = vsel %vm226, %v229, %v231
    %v233 = vsel %vm225, %v212, %v215
    %v234 = vsel %vm228, %v221, 920167782
    %v235 = vsel %vm227, %v218, %v234
    %v236 = vsel %vm226, %v233, %v235
    %v237 = vsel %vm225, %v215, %v218
    %v238 = vsel %vm228, %v224, 1326507024
    %v239 = vsel %vm227, %v221, %v238
    %v240 = vsel %vm226, %v237, %v239
    %v241 = vshll.u32 %v201, 8
    %v242 = vmul.u32.u64.compose %v241, %v240
    %v243 = vextract.low.u32 %v242
    %v244 = vextract.high.u32 %v242
    %v245 = vmul.u32.u64.compose %v241, %v236
    %v246 = vextract.low.u32 %v245
    %v247 = vextract.high.u32 %v245
    %v248 = vmul.u32 %v241, %v232
    %v249 = vadd.s32 %v244, %v246
    %vm250 = vc.u32 %v244, %v246
    %v251 = vadd.s32 %v247, 1
    %v252 = vsel %vm250, %v251, %v247
    %v253 = vadd.s32 %v248, %v252
    %v254 = vadd.s32 %v253, 536870912
    %v255 = vshrl.u32 %v254, 30
    %v256 = vshll.u32 %v255, 30
    %v257 = vsub.s32 %v253, %v256
    %vm258 = vcmp.lt.s32.totalorder %v257, 0
    %v259 = vsub.s32 0, %v257
    %v260 = vsel %vm258, %v259, %v257
    %v261 = vclz %v260
    %v262 = vsub.s32 %v261, 2
    %vm263 = vcmp.gt.s32.totalorder 0, %v262
    %v264 = vsel %vm263, 0, %v262
    %v265 = vsub.s32 32, %v264
    %v266 = vshll.u32 %v257, %v264
    %v267 = vshrl.u32 %v249, %v265
    %v268 = vor.u32 %v266, %v267
    %v269 = vsub.s32 4294967266, %v264
    %v270 = vadd.s32 %v269, 127
    %v271 = vshll.u32 %v270, 23
    %v272 = vor.u32 4788187, %v271
    %v273 = vand.u32 2147483647, %v272
    %v275 = vcvt.s32.f32 %v268
    %v276 = vmul.f32 %v275, %v273
    %v277 = vxor.u32 %v276, 2147483648
    %v278 = vsel %vm195, %v277, %v276
    %v279 = vsub.s32 4, %v255
    %v280 = vsel %vm195, %v279, %v255
    %v281 = vsel %vm194, %v89, %v278
    %v282 = vsel %vm194, 0, %v280
    %v283 = vcosq.f32.pop %v281
    %v284 = vsinq.f32.pop %v281
    %vm285 = vweird.f32 %v89
    %v286 = vadd.s32 %v282, 3
    %v287 = vand.u32 %v286, 3
    %vm288 = vcmp.lt.s32.totalorder %v287, 2
    %vm289 = vcmp.eq.s32.totalorder %v287, 0
    %v290 = vxor.u32 %v284, 2147483648
    %v291 = vsel %vm289, %v283, %v290
    %vm292 = vcmp.eq.s32.totalorder %v287, 2
    %v293 = vxor.u32 %v283, 2147483648
    %v294 = vsel %vm292, %v293, %v284
    %v295 = vsel %vm288, %v291, %v294
    %v296 = vsel %vm285, nan, %v295
    %v297 = vld [vmem:[#allocation5] sm:$0xff]
    %v298 = vld [vmem:[#allocation7] sm:$0xff]
    %v299 = vld [vmem:[#allocation7 + $0x8] sm:$0xff]
    %v300 = vld [vmem:[#allocation7 + $0x10] sm:$0xff]
    %v301 = vld [vmem:[#allocation7 + $0x18] sm:$0xff]
    %v302 = vld [vmem:[#allocation7 + $0x20] sm:$0xff]
    %v303 = vld [vmem:[#allocation7 + $0x28] sm:$0xff]
    %v304 = vld [vmem:[#allocation7 + $0x30] sm:$0xff]
    %v305 = vld [vmem:[#allocation7 + $0x38] sm:$0xff]
    %v306 = vld [vmem:[%s3] sm:$0xff]
    %vm307 = vcmask 64512
    %v309 = vsel %vm307, %v192, 0
    %311 = vmatprep.subr.mxu0 0.0
    %312 = vmatpush1.msra.mxu0 %v306
    %313 = vmatprep.subr.mxu0 0.0
    %314 = vmatpush1.msra.mxu0 0.0
    %315 = vmatprep.subr.mxu0 0.0
    %316 = vmatpush1.msra.mxu0 0.0
    %317 = vmatprep.subr.mxu0 0.0
    %318 = vmatpush1.msra.mxu0 0.0
    %319 = vmatprep.subr.mxu0 0.0
    %320 = vmatpush1.msra.mxu0 0.0
    %321 = vmatprep.subr.mxu0 0.0
    %322 = vmatpush1.msra.mxu0 0.0
    %323 = vmatprep.subr.mxu0 0.0
    %324 = vmatpush1.msra.mxu0 0.0
    %325 = vmatprep.subr.mxu0 0.0
    %326 = vmatpush1.msra.mxu0 0.0
    %327 = vmatprep.subr.mxu0 0.0
    %328 = vmatpush1.msra.mxu0 0.0
    %329 = vmatprep.subr.mxu0 0.0
    %330 = vmatpush1.msra.mxu0 0.0
    %331 = vmatprep.subr.mxu0 0.0
    %332 = vmatpush1.msra.mxu0 0.0
    %333 = vmatprep.subr.mxu0 0.0
    %334 = vmatpush1.msra.mxu0 0.0
    %335 = vmatprep.subr.mxu0 0.0
    %336 = vmatpush1.msra.mxu0 0.0
    %337 = vmatprep.subr.mxu0 0.0
    %338 = vmatpush1.msra.mxu0 0.0
    %339 = vmatprep.subr.mxu0 0.0
    %340 = vmatpush1.msra.mxu0 0.0
    %341 = vmatprep.subr.mxu0 0.0
    %342 = vmatpush1.msra.mxu0 0.0
    %343 = vmatprep.subr.mxu0 0.0
    %344 = vmatpush1.msra.mxu0 0.0
    %345 = vmatprep.subr.mxu0 0.0
    %346 = vmatpush1.msra.mxu0 0.0
    %347 = vmatprep.subr.mxu0 0.0
    %348 = vmatpush1.msra.mxu0 0.0
    %349 = vmatprep.subr.mxu0 0.0
    %350 = vmatpush1.msra.mxu0 0.0
    %351 = vmatprep.subr.mxu0 0.0
    %352 = vmatpush1.msra.mxu0 0.0
    %353 = vmatprep.subr.mxu0 0.0
    %354 = vmatpush1.msra.mxu0 0.0
    %355 = vmatprep.subr.mxu0 0.0
    %356 = vmatpush1.msra.mxu0 0.0
    %357 = vmatprep.subr.mxu0 0.0
    %358 = vmatpush1.msra.mxu0 0.0
    %359 = vmatprep.subr.mxu0 0.0
    %360 = vmatpush1.msra.mxu0 0.0
    %361 = vmatprep.subr.mxu0 0.0
    %362 = vmatpush1.msra.mxu0 0.0
    %363 = vmatprep.subr.mxu0 0.0
    %364 = vmatpush1.msra.mxu0 0.0
    %365 = vmatprep.subr.mxu0 0.0
    %366 = vmatpush1.msra.mxu0 0.0
    %367 = vmatprep.subr.mxu0 0.0
    %368 = vmatpush1.msra.mxu0 0.0
    %369 = vmatprep.subr.mxu0 0.0
    %370 = vmatpush1.msra.mxu0 0.0
    %371 = vmatprep.subr.mxu0 0.0
    %372 = vmatpush1.msra.mxu0 0.0
    %373 = vmatprep.subr.mxu0 0.0
    %374 = vmatpush1.msra.mxu0 0.0
    %375 = vmatprep.mubr.f32.mxu0 0.0
    %376 = vmatmul.mubr.f32.gmra.mrb[0].mxu0 %v309
    %v377 = vpop.f32.mrb[0].mxu0
    %v378 = vadd.f32 0.0, %v377
    %v379 = vpop.f32.mrb[0].mxu0
    %380 = vdwg.mxu0
    %vm381 = vcmask 523264
    %v383 = vsel %vm381, %v297, 0
    %385 = vmatprep.subr.mxu0 0.0
    %386 = vmatpush1.msra.mxu0 %v298
    %387 = vmatprep.subr.mxu0 0.0
    %388 = vmatpush1.msra.mxu0 %v299
    %389 = vmatprep.subr.mxu0 0.0
    %390 = vmatpush1.msra.mxu0 %v300
    %391 = vmatprep.subr.mxu0 0.0
    %392 = vmatpush1.msra.mxu0 %v301
    %393 = vmatprep.subr.mxu0 0.0
    %394 = vmatpush1.msra.mxu0 %v302
    %395 = vmatprep.subr.mxu0 0.0
    %396 = vmatpush1.msra.mxu0 %v303
    %397 = vmatprep.subr.mxu0 0.0
    %398 = vmatpush1.msra.mxu0 %v304
    %399 = vmatprep.subr.mxu0 0.0
    %400 = vmatpush1.msra.mxu0 %v305
    %401 = vmatprep.subr.mxu0 0.0
    %402 = vmatpush1.msra.mxu0 0.0
    %403 = vmatprep.subr.mxu0 0.0
    %404 = vmatpush1.msra.mxu0 0.0
    %405 = vmatprep.subr.mxu0 0.0
    %406 = vmatpush1.msra.mxu0 0.0
    %407 = vmatprep.subr.mxu0 0.0
    %408 = vmatpush1.msra.mxu0 0.0
    %409 = vmatprep.subr.mxu0 0.0
    %410 = vmatpush1.msra.mxu0 0.0
    %411 = vmatprep.subr.mxu0 0.0
    %412 = vmatpush1.msra.mxu0 0.0
    %413 = vmatprep.subr.mxu0 0.0
    %414 = vmatpush1.msra.mxu0 0.0
    %415 = vmatprep.subr.mxu0 0.0
    %416 = vmatpush1.msra.mxu0 0.0
    %417 = vmatprep.subr.mxu0 0.0
    %418 = vmatpush1.msra.mxu0 0.0
    %419 = vmatprep.subr.mxu0 0.0
    %420 = vmatpush1.msra.mxu0 0.0
    %421 = vmatprep.subr.mxu0 0.0
    %422 = vmatpush1.msra.mxu0 0.0
    %423 = vmatprep.subr.mxu0 0.0
    %424 = vmatpush1.msra.mxu0 0.0
    %425 = vmatprep.subr.mxu0 0.0
    %426 = vmatpush1.msra.mxu0 0.0
    %427 = vmatprep.subr.mxu0 0.0
    %428 = vmatpush1.msra.mxu0 0.0
    %429 = vmatprep.subr.mxu0 0.0
    %430 = vmatpush1.msra.mxu0 0.0
    %431 = vmatprep.subr.mxu0 0.0
    %432 = vmatpush1.msra.mxu0 0.0
    %433 = vmatprep.subr.mxu0 0.0
    %434 = vmatpush1.msra.mxu0 0.0
    %435 = vmatprep.subr.mxu0 0.0
    %436 = vmatpush1.msra.mxu0 0.0
    %437 = vmatprep.subr.mxu0 0.0
    %438 = vmatpush1.msra.mxu0 0.0
    %439 = vmatprep.subr.mxu0 0.0
    %440 = vmatpush1.msra.mxu0 0.0
    %441 = vmatprep.subr.mxu0 0.0
    %442 = vmatpush1.msra.mxu0 0.0
    %443 = vmatprep.subr.mxu0 0.0
    %444 = vmatpush1.msra.mxu0 0.0
    %445 = vmatprep.subr.mxu0 0.0
    %446 = vmatpush1.msra.mxu0 0.0
    %447 = vmatprep.subr.mxu0 0.0
    %448 = vmatpush1.msra.mxu0 0.0
    %449 = vmatprep.mubr.f32.mxu0 0.0
    %450 = vmatmul.mubr.f32.gmra.mrb[0].mxu0 %v383
    %v451 = vpop.f32.mrb[0].mxu0
    %v452 = vadd.f32 %v378, %v451
    %v453 = vpop.f32.mrb[0].mxu0
    %454 = vdwg.mxu0
    %v455 = vld [vmem:[#allocation8] sm:$0xff]
    %v457 = vsel %vm307, %v296, 0
    %459 = vmatprep.subr.mxu0 0.0
    %460 = vmatpush1.msra.mxu0 %v455
    %461 = vmatprep.subr.mxu0 0.0
    %462 = vmatpush1.msra.mxu0 0.0
    %463 = vmatprep.subr.mxu0 0.0
    %464 = vmatpush1.msra.mxu0 0.0
    %465 = vmatprep.subr.mxu0 0.0
    %466 = vmatpush1.msra.mxu0 0.0
    %467 = vmatprep.subr.mxu0 0.0
    %468 = vmatpush1.msra.mxu0 0.0
    %469 = vmatprep.subr.mxu0 0.0
    %470 = vmatpush1.msra.mxu0 0.0
    %471 = vmatprep.subr.mxu0 0.0
    %472 = vmatpush1.msra.mxu0 0.0
    %473 = vmatprep.subr.mxu0 0.0
    %474 = vmatpush1.msra.mxu0 0.0
    %475 = vmatprep.subr.mxu0 0.0
    %476 = vmatpush1.msra.mxu0 0.0
    %477 = vmatprep.subr.mxu0 0.0
    %478 = vmatpush1.msra.mxu0 0.0
    %479 = vmatprep.subr.mxu0 0.0
    %480 = vmatpush1.msra.mxu0 0.0
    %481 = vmatprep.subr.mxu0 0.0
    %482 = vmatpush1.msra.mxu0 0.0
    %483 = vmatprep.subr.mxu0 0.0
    %484 = vmatpush1.msra.mxu0 0.0
    %485 = vmatprep.subr.mxu0 0.0
    %486 = vmatpush1.msra.mxu0 0.0
    %487 = vmatprep.subr.mxu0 0.0
    %488 = vmatpush1.msra.mxu0 0.0
    %489 = vmatprep.subr.mxu0 0.0
    %490 = vmatpush1.msra.mxu0 0.0
    %491 = vmatprep.subr.mxu0 0.0
    %492 = vmatpush1.msra.mxu0 0.0
    %493 = vmatprep.subr.mxu0 0.0
    %494 = vmatpush1.msra.mxu0 0.0
    %495 = vmatprep.subr.mxu0 0.0
    %496 = vmatpush1.msra.mxu0 0.0
    %497 = vmatprep.subr.mxu0 0.0
    %498 = vmatpush1.msra.mxu0 0.0
    %499 = vmatprep.subr.mxu0 0.0
    %500 = vmatpush1.msra.mxu0 0.0
    %501 = vmatprep.subr.mxu0 0.0
    %502 = vmatpush1.msra.mxu0 0.0
    %503 = vmatprep.subr.mxu0 0.0
    %504 = vmatpush1.msra.mxu0 0.0
    %505 = vmatprep.subr.mxu0 0.0
    %506 = vmatpush1.msra.mxu0 0.0
    %507 = vmatprep.subr.mxu0 0.0
    %508 = vmatpush1.msra.mxu0 0.0
    %509 = vmatprep.subr.mxu0 0.0
    %510 = vmatpush1.msra.mxu0 0.0
    %511 = vmatprep.subr.mxu0 0.0
    %512 = vmatpush1.msra.mxu0 0.0
    %513 = vmatprep.subr.mxu0 0.0
    %514 = vmatpush1.msra.mxu0 0.0
    %515 = vmatprep.subr.mxu0 0.0
    %516 = vmatpush1.msra.mxu0 0.0
    %517 = vmatprep.subr.mxu0 0.0
    %518 = vmatpush1.msra.mxu0 0.0
    %519 = vmatprep.subr.mxu0 0.0
    %520 = vmatpush1.msra.mxu0 0.0
    %521 = vmatprep.subr.mxu0 0.0
    %522 = vmatpush1.msra.mxu0 0.0
    %523 = vmatprep.mubr.f32.mxu0 0.0
    %524 = vmatmul.mubr.f32.gmra.mrb[0].mxu0 %v457
    %v525 = vpop.f32.mrb[0].mxu0
    %v526 = vadd.f32 0.0, %v525
    %v527 = vpop.f32.mrb[0].mxu0
    %528 = vdwg.mxu0
    %v529 = vadd.f32 %v452, %v526
    %v530 = vld [vmem:[%s6] sm:$0x1]
    %v531 = vlaneseq
    %v532 = vshrl.u32 %v531, 7
    %v533 = vsub.s32 0, %v532
    %v534 = vrot.slane %v530, %v533
    %v535 = vadd.f32 %v529, %v534
    %v536 = vtanh.pop %v535
    %v537 = vld [vmem:[#allocation10] sm:$0xff]
    %v538 = vld [vmem:[#allocation10 + $0x8] sm:$0xff]
    %v539 = vld [vmem:[#allocation10 + $0x10] sm:$0xff]
    %v540 = vld [vmem:[#allocation10 + $0x18] sm:$0xff]
    %v541 = vld [vmem:[#allocation10 + $0x20] sm:$0xff]
    %v542 = vld [vmem:[#allocation10 + $0x28] sm:$0xff]
    %v543 = vld [vmem:[#allocation10 + $0x30] sm:$0xff]
    %v544 = vld [vmem:[#allocation10 + $0x38] sm:$0xff]
    %v545 = vld [vmem:[#allocation10 + $0x40] sm:$0xff]
    %v546 = vld [vmem:[#allocation10 + $0x48] sm:$0xff]
    %v547 = vld [vmem:[#allocation10 + $0x50] sm:$0xff]
    %v548 = vld [vmem:[#allocation10 + $0x58] sm:$0xff]
    %v549 = vld [vmem:[#allocation10 + $0x60] sm:$0xff]
    %v550 = vld [vmem:[#allocation10 + $0x68] sm:$0xff]
    %v551 = vld [vmem:[#allocation10 + $0x70] sm:$0xff]
    %v552 = vld [vmem:[#allocation10 + $0x78] sm:$0xff]
    %v553 = vld [vmem:[%s6 + $0x1] sm:$0x1]
    %v554 = vlaneseq
    %v555 = vshrl.u32 %v554, 7
    %v556 = vsub.s32 0, %v555
    %v557 = vrot.slane %v553, %v556
    %558 = vmatprep.subr.mxu0 0.0
    %559 = vmatpush1.msra.mxu0 %v537
    %560 = vmatprep.subr.mxu0 0.0
    %561 = vmatpush1.msra.mxu0 %v538
    %562 = vmatprep.subr.mxu0 0.0
    %563 = vmatpush1.msra.mxu0 %v539
    %564 = vmatprep.subr.mxu0 0.0
    %565 = vmatpush1.msra.mxu0 %v540
    %566 = vmatprep.subr.mxu0 0.0
    %567 = vmatpush1.msra.mxu0 %v541
    %568 = vmatprep.subr.mxu0 0.0
    %569 = vmatpush1.msra.mxu0 %v542
    %570 = vmatprep.subr.mxu0 0.0
    %571 = vmatpush1.msra.mxu0 %v543
    %572 = vmatprep.subr.mxu0 0.0
    %573 = vmatpush1.msra.mxu0 %v544
    %574 = vmatprep.subr.mxu0 0.0
    %575 = vmatpush1.msra.mxu0 %v545
    %576 = vmatprep.subr.mxu0 0.0
    %577 = vmatpush1.msra.mxu0 %v546
    %578 = vmatprep.subr.mxu0 0.0
    %579 = vmatpush1.msra.mxu0 %v547
    %580 = vmatprep.subr.mxu0 0.0
    %581 = vmatpush1.msra.mxu0 %v548
    %582 = vmatprep.subr.mxu0 0.0
    %583 = vmatpush1.msra.mxu0 %v549
    %584 = vmatprep.subr.mxu0 0.0
    %585 = vmatpush1.msra.mxu0 %v550
    %586 = vmatprep.subr.mxu0 0.0
    %587 = vmatpush1.msra.mxu0 %v551
    %588 = vmatprep.subr.mxu0 0.0
    %589 = vmatpush1.msra.mxu0 %v552
    %590 = vmatprep.subr.mxu0 0.0
    %591 = vmatpush1.msra.mxu0 0.0
    %592 = vmatprep.subr.mxu0 0.0
    %593 = vmatpush1.msra.mxu0 0.0
    %594 = vmatprep.subr.mxu0 0.0
    %595 = vmatpush1.msra.mxu0 0.0
    %596 = vmatprep.subr.mxu0 0.0
    %597 = vmatpush1.msra.mxu0 0.0
    %598 = vmatprep.subr.mxu0 0.0
    %599 = vmatpush1.msra.mxu0 0.0
    %600 = vmatprep.subr.mxu0 0.0
    %601 = vmatpush1.msra.mxu0 0.0
    %602 = vmatprep.subr.mxu0 0.0
    %603 = vmatpush1.msra.mxu0 0.0
    %604 = vmatprep.subr.mxu0 0.0
    %605 = vmatpush1.msra.mxu0 0.0
    %606 = vmatprep.subr.mxu0 0.0
    %607 = vmatpush1.msra.mxu0 0.0
    %608 = vmatprep.subr.mxu0 0.0
    %609 = vmatpush1.msra.mxu0 0.0
    %610 = vmatprep.subr.mxu0 0.0
    %611 = vmatpush1.msra.mxu0 0.0
    %612 = vmatprep.subr.mxu0 0.0
    %613 = vmatpush1.msra.mxu0 0.0
    %614 = vmatprep.subr.mxu0 0.0
    %615 = vmatpush1.msra.mxu0 0.0
    %616 = vmatprep.subr.mxu0 0.0
    %617 = vmatpush1.msra.mxu0 0.0
    %618 = vmatprep.subr.mxu0 0.0
    %619 = vmatpush1.msra.mxu0 0.0
    %620 = vmatprep.subr.mxu0 0.0
    %621 = vmatpush1.msra.mxu0 0.0
    %622 = vmatprep.mubr.f32.mxu0 0.0
    %623 = vmatmul.mubr.f32.gmra.mrb[0].mxu0 %v536
    %v624 = vpop.f32.mrb[0].mxu0
    %v625 = vadd.f32 %v557, %v624
    %v626 = vpop.f32.mrb[0].mxu0
    %627 = vdwg.mxu0
    %628 = vst [vmem:[#allocation11] sm:$0xff] %v625
    // Predicated region
    $region50: #{tpu_custom_call.1} parent=1 // pred_check
      _
    $region51: #{tpu_custom_call.1} parent=1 // pred_check_branch
      %630 = sbr.rel (0) target = $region53
    $region52: #{tpu_custom_call.1} parent=1 // pred_region
      %s632 = ssub.s32 128, 128
      %633 = vsyncadd [#allocation4], %s632
      %s635 = sshll.u32 [#allocation11], 4
      %s636 = int_to_ptr.vmem [resolvable:$true] %s635
      %638 = dma.vmem_to_hbm [thread:$0]  %s636, 128, %s7, [#allocation4]
    $region53: #{tpu_custom_call.1} parent=1 // pred_fallthru
      _
    // Predicated region
    $region54: #{tpu_custom_call.1} parent=1 // pred_check
      _
    $region55: #{tpu_custom_call.1} parent=1 // pred_check_branch
      %640 = sbr.rel (0) target = $region57
    $region56: #{tpu_custom_call.1} parent=1 // pred_region
      %641 = dma.done [#allocation4], 128
    $region57: #{tpu_custom_call.1} parent=1 // pred_fallthru
      _
    %642 = vsyncpa [#allocation3], 1
    %643 = vsyncpa [#allocation6], 1
    %644 = vsyncpa [#allocation9], 1
    %645 = vsyncpa [#allocation4], 1

</llo_original>
